<compile_context>
chip_gen: v7x
topology: tpu7x:2x2x1
jax: 0.10.0
libtpu: 0.0.40
codegen_flags: <defaults>
</compile_context>

<pallas_src>
import functools

import jax
import jax.numpy as jnp
from jax.experimental import pallas as pl
from jax.experimental.pallas import tpu as pltpu


def _round_up(a: int, m: int) -> int:
    return ((a + m - 1) // m) * m


def _vmem_limit_bytes() -> int:
    """Per-chip scoped-VMEM cap: ~3/4 of physical (v5e/v6e 128 MiB -> 96 MiB,
    v7x 64 MiB/TC -> 48 MiB)."""
    cap = None
    try:
        cap = int(pltpu.get_tpu_info().vmem_capacity_bytes)
    except Exception:
        cap = None
    if not cap:
        kind = getattr(jax.devices()[0], "device_kind", "").lower()
        cap = (64 if "v7" in kind else 128) * 1024 * 1024
    return int(min(cap * 3 // 4, 100 * 1024 * 1024))


def _pick_bag_tile(n_bags: int, n_inst: int, inp: int, vmem_limit: int) -> int:
    """Bags per grid step: big enough to amortize per-step overhead and fill the MXU
    (>=512 streamed rows when the batch allows), small enough to keep >= 2 grid steps
    (megacore sharding + DMA/compute overlap) and to fit the streamed x block plus the
    f32 keys intermediate comfortably beside the resident weights."""
    target = _round_up(min(256, max(64, pl.cdiv(512, max(n_inst, 1)))), 8)
    half = _round_up(max(1, (n_bags + 1) // 2), 8)          # ~B/2 -> >= 2 grid steps
    tile = max(8, min(target, half))

    def step_bytes(t):  # double-buffered bf16 x block + f32 keys intermediate
        return t * n_inst * inp * (2 * 2 + 4)

    while tile > 8 and step_bytes(tile) > vmem_limit // 4:
        tile -= 8
    return tile


def ffnn_kernel(x_ref, wa_ref, ba_ref, wq_ref, bq_ref,
                wv_ref, bv_ref, ww_ref, bw_ref, o_ref,
                *, n_inst: int, bags: int):
    """Processes `bags` bags of `n_inst` instances each.

    x_ref : [bags * n_inst, inp] bf16    wa_ref: [inp, inp] bf16   ba_ref: [1, inp] f32
    wq_ref: [1, inp] f32 (query weight row)      bq_ref: [1] f32 in SMEM
    wv_ref: [inp, hid] bf16   bv_ref: [1, hid] f32
    ww_ref: [hid, out_pad] bf16   bw_ref: [1, out_pad] f32
    o_ref : [bags, out_pad] f32
    """
    rows = bags * n_inst
    x = x_ref[...]                                                    # [rows, inp] bf16

    # keys = LeakyReLU(x @ Wa + ba): bf16 MXU operands, f32 accumulation / elementwise.
    keys = jnp.dot(x, wa_ref[...], preferred_element_type=jnp.float32)   # [rows, inp]
    keys = keys + ba_ref[...]
    keys = jnp.maximum(keys, 0.01 * keys)                             # LeakyReLU(0.01)

    # Attention scores: VPU multiply + lane reduce (no 1-wide MXU matmul).
    # (bq cancels inside the softmax mathematically, kept for faithfulness.)
    scores = jnp.sum(keys * wq_ref[...], axis=-1, keepdims=True) + bq_ref[0]   # [rows,1]

    # Bag-membership masks built from iota (no data relayout), in both orientations.
    r_rb = jax.lax.broadcasted_iota(jnp.int32, (rows, bags), 0)
    b_rb = jax.lax.broadcasted_iota(jnp.int32, (rows, bags), 1)
    member_rb = (r_rb >= b_rb * n_inst) & (r_rb < (b_rb + 1) * n_inst)   # [rows, bags]
    b_br = jax.lax.broadcasted_iota(jnp.int32, (bags, rows), 0)
    r_br = jax.lax.broadcasted_iota(jnp.int32, (bags, rows), 1)
    member_br = (r_br >= b_br * n_inst) & (r_br < (b_br + 1) * n_inst)   # [bags, rows]

    # Per-bag max, scattered back to rows, so exp runs once per instance row.
    s_cols = jnp.where(member_rb, scores, jnp.float32(-1e30))        # [rows, bags]
    m_b = jnp.max(s_cols, axis=0, keepdims=True)                     # [1, bags]
    m_row = jnp.sum(jnp.where(member_rb, m_b, 0.0),
                    axis=1, keepdims=True)                           # [rows, 1]
    e_row = jnp.exp(scores - m_row)                                  # [rows, 1] (rows exps)

    # Attention-weighted average as one standard bf16 MXU matmul, normalize after.
    mem_bf = member_br.astype(jnp.bfloat16)                          # [bags, rows] 0/1
    e_bf = e_row.astype(jnp.bfloat16)                                # [rows, 1]
    l_b = jnp.dot(mem_bf, e_bf, preferred_element_type=jnp.float32)  # [bags, 1] partition sums
    num = jnp.dot(mem_bf, e_bf * x, preferred_element_type=jnp.float32)   # [bags, inp]
    # l_b is a tiny [bags,1] vector -> exact reciprocal (approx=True only if it binds).
    weighted = num * pl.reciprocal(l_b, approx=False)                # [bags, inp] f32

    # FFNN head: out = W(tanh(V(weighted))); dropout is identity at inference.
    h = jnp.tanh(jnp.dot(weighted.astype(jnp.bfloat16), wv_ref[...],
                         preferred_element_type=jnp.float32) + bv_ref[...])   # [bags, hid]
    out = jnp.dot(h.astype(jnp.bfloat16), ww_ref[...],
                  preferred_element_type=jnp.float32) + bw_ref[...]           # [bags, out_pad]
    o_ref[...] = out.astype(o_ref.dtype)


def ffnn_forward_batched(x_bags, params):
    """x_bags: [B, N, inp] (B independent bags). Returns [B, out]."""
    wa, ba, wq, bq, wv, bv, ww, bw = params
    B, N, INP = x_bags.shape
    HID = wv.shape[1]
    OUT = ww.shape[1]

    vmem_limit = _vmem_limit_bytes()
    bag_tile = _pick_bag_tile(B, N, INP, vmem_limit)
    b_pad = bag_tile * pl.cdiv(B, bag_tile)
    out_pad = 128 * pl.cdiv(OUT, 128)                # lane-dense output slab

    # x streams as bf16; skip the full-batch pad copy when B already divides the tile.
    x_bf = x_bags.astype(jnp.bfloat16)
    if b_pad == B:
        x_rows = x_bf.reshape(B * N, INP)
    else:
        # TODO(synk): mask the ragged last tile in-kernel instead of padding the tail.
        x_rows = (jnp.zeros((b_pad, N, INP), jnp.bfloat16).at[:B].set(x_bf)
                  .reshape(b_pad * N, INP))

    # bf16 matmul operands (f32 accumulation in-kernel); biases / query row stay f32.
    wa_bf = wa.astype(jnp.bfloat16)
    wv_bf = wv.astype(jnp.bfloat16)
    ww_bf = jnp.zeros((HID, out_pad), jnp.float32).at[:, :OUT].set(ww).astype(jnp.bfloat16)
    bw_pd = jnp.zeros((1, out_pad), jnp.float32).at[:, :OUT].set(bw)
    wq_row = wq.reshape(1, INP)
    bq_s = bq.reshape(1)

    grid = (b_pad // bag_tile,)
    rows_tile = bag_tile * N
    rows_total = b_pad * N
    kernel = functools.partial(ffnn_kernel, n_inst=N, bags=bag_tile)

    cost = pl.CostEstimate(
        flops=int(2 * rows_total * INP * INP            # keys matmul
                  + 6 * rows_total * INP                # leaky + query reduce
                  + 2 * b_pad * rows_tile * (INP + 1)   # weighted average + partition sums
                  + 2 * b_pad * INP * HID               # V
                  + 2 * b_pad * HID * out_pad),         # W
        transcendentals=int(rows_total + b_pad * HID),  # one exp per row + tanh
        bytes_accessed=int(2 * x_rows.size              # bf16 x stream
                           + 2 * (wa_bf.size + wv_bf.size + ww_bf.size)
                           + 4 * (ba.size + wq_row.size + 1 + bv.size + bw_pd.size)
                           + 4 * b_pad * out_pad),
    )

    out = pl.pallas_call(
        kernel,
        out_shape=jax.ShapeDtypeStruct((b_pad, out_pad), jnp.float32),
        grid=grid,
        in_specs=[
            pl.BlockSpec((rows_tile, INP), lambda b: (b, 0)),        # x rows (bf16, streamed)
            pl.BlockSpec((INP, INP), lambda b: (0, 0)),              # Wa (VMEM-resident)
            pl.BlockSpec((1, INP), lambda b: (0, 0)),                # ba
            pl.BlockSpec((1, INP), lambda b: (0, 0)),                # wq row
            pl.BlockSpec(memory_space=pltpu.MemorySpace.SMEM),       # bq scalar
            pl.BlockSpec((INP, HID), lambda b: (0, 0)),              # V weight
            pl.BlockSpec((1, HID), lambda b: (0, 0)),                # V bias
            pl.BlockSpec((HID, out_pad), lambda b: (0, 0)),          # W weight (padded)
            pl.BlockSpec((1, out_pad), lambda b: (0, 0)),            # W bias (padded)
        ],
        out_specs=pl.BlockSpec((bag_tile, out_pad), lambda b: (b, 0)),
        compiler_params=pltpu.CompilerParams(
            dimension_semantics=("parallel",),       # independent bag-tiles -> both v7x TCs
            vmem_limit_bytes=vmem_limit),
        cost_estimate=cost,
    )(x_rows, wa_bf, ba, wq_row, bq_s, wv_bf, bv, ww_bf, bw_pd)
    return out[:B, :OUT]


def ffnn_forward(x, params):
    """Single bag [N, inp] -> [out], matching FFNN.forward(x)."""
    return ffnn_forward_batched(x[None], params)[0]


def init_params(key, inp, hid, out):
    """Deterministic parameter init mirroring the PyTorch module's __init__."""
    k = jax.random.split(key, 6)

    def uniform(rng, shape, fan_in):
        bound = 1.0 / jnp.sqrt(fan_in)
        return jax.random.uniform(rng, shape, jnp.float32, -bound, bound)

    # AttentionSoftMax: Linear(inp, inp) and Linear(inp, 1) -- default PyTorch init.
    wa = uniform(k[0], (inp, inp), inp)        # stored [in, out]
    ba = uniform(k[1], (1, inp), inp)
    wq = uniform(k[2], (inp, 1), inp)
    bq = uniform(k[3], (1, 1), inp)

    # V = Linear(inp, hid): weight zero-initialized (nn.init.zeros_), bias default init.
    wv = jnp.zeros((inp, hid), jnp.float32)
    bv = uniform(k[4], (1, hid), inp)

    # W = Linear(hid, out): weight zero-initialized, bias default init.
    ww = jnp.zeros((hid, out), jnp.float32)
    bw = uniform(k[5], (1, out), hid)

    return (wa, ba, wq, bq, wv, bv, ww, bw)


def ffnn_reference(x_bags, params, *, mixed=True):
    """Pure-JAX reference.  mixed=True mirrors the kernel's bf16-operand matmuls and
    bf16 x stream (f32 accumulation); mixed=False is pure-f32 PyTorch semantics."""
    wa, ba, wq, bq, wv, bv, ww, bw = params
    cast = (lambda a: a.astype(jnp.bfloat16)) if mixed else (lambda a: a)

    def one_bag(x):
        xc = cast(x)
        keys = jnp.dot(xc, cast(wa), preferred_element_type=jnp.float32) + ba[0]
        keys = jnp.where(keys > 0, keys, 0.01 * keys)
        scores = keys @ wq[:, 0] + bq[0, 0]
        attn = jax.nn.softmax(scores, axis=-1)
        weighted = jnp.dot(cast(attn), xc, preferred_element_type=jnp.float32)
        h = jnp.tanh(jnp.dot(cast(weighted), cast(wv),
                             preferred_element_type=jnp.float32) + bv[0])
        return jnp.dot(cast(h), cast(ww), preferred_element_type=jnp.float32) + bw[0]

    return jax.vmap(one_bag)(x_bags)


if __name__ == "__main__":
    # bag_size N, input size, hidden size, #classes -- small shapes matching the module.
    N, INP, HID, OUT = 8, 16, 32, 4
    B = 16  # batched bags; tile picker keeps >= 2 grid steps -> 2 steps of 8 bags here

    key = jax.random.PRNGKey(0)
    kx, kp, kv, kw = jax.random.split(key, 4)
    x_bags = jax.random.normal(kx, (B, N, INP), jnp.float32)

    # Module-faithful init (V.weight / W.weight are zero-initialized in the PyTorch code).
    params = init_params(kp, INP, HID, OUT)
    y = jax.block_until_ready(ffnn_forward_batched(x_bags, params))
    assert y.shape == (B, OUT)
    assert jnp.allclose(y, ffnn_reference(x_bags, params, mixed=True), atol=2e-3, rtol=2e-3)

    # Also exercise the full datapath with non-zero V/W weights.
    wa, ba, wq, bq, wv, bv, ww, bw = params
    params2 = (wa, ba, wq, bq,
               0.1 * jax.random.normal(kv, (INP, HID), jnp.float32), bv,
               0.1 * jax.random.normal(kw, (HID, OUT), jnp.float32), bw)
    y2 = jax.block_until_ready(ffnn_forward_batched(x_bags, params2))
    # Same mixed-precision recipe as the kernel -> tight tolerance.
    assert jnp.allclose(y2, ffnn_reference(x_bags, params2, mixed=True), atol=2e-3, rtol=2e-3)
    # Against pure f32 the only difference is bf16 operand rounding in the matmuls.
    assert jnp.allclose(y2, ffnn_reference(x_bags, params2, mixed=False), atol=5e-2, rtol=5e-2)

    # Single-bag API, matching FFNN.forward(x) on one [N, inp] bag.
    y1 = jax.block_until_ready(ffnn_forward(x_bags[0], params2))
    assert jnp.allclose(y1, y2[0], atol=1e-5, rtol=1e-5)

    print("KERNEL_OK")
</pallas_src>

<mosaic_0001>
module attributes {stable_mosaic.version = 11 : i64} {
  func.func @ffnn_kernel(%arg0: i32, %arg1: memref<64x16xbf16, #tpu.memory_space<vmem>>, %arg2: memref<16x16xbf16, #tpu.memory_space<vmem>>, %arg3: memref<1x16xf32, #tpu.memory_space<vmem>>, %arg4: memref<1x16xf32, #tpu.memory_space<vmem>>, %arg5: memref<1xf32, #tpu.memory_space<smem>>, %arg6: memref<16x32xbf16, #tpu.memory_space<vmem>>, %arg7: memref<1x32xf32, #tpu.memory_space<vmem>>, %arg8: memref<32x128xbf16, #tpu.memory_space<vmem>>, %arg9: memref<1x128xf32, #tpu.memory_space<vmem>>, %arg10: memref<8x128xf32, #tpu.memory_space<vmem>>) attributes {dimension_semantics = [#tpu.dimension_semantics<parallel>], iteration_bounds = array<i64: 2>, scalar_prefetch = 0 : i64, scratch_operands = 0 : i64, tpu.core_type = #tpu.core_type<tc>, window_params = [{transform_indices = @transform_0, window_bounds = array<i64: 64, 16>}, {pipeline_mode = #tpu.pipeline_mode<synchronous>, transform_indices = @transform_1, window_bounds = array<i64: 16, 16>}, {pipeline_mode = #tpu.pipeline_mode<synchronous>, transform_indices = @transform_2, window_bounds = array<i64: 1, 16>}, {pipeline_mode = #tpu.pipeline_mode<synchronous>, transform_indices = @transform_3, window_bounds = array<i64: 1, 16>}, {transform_indices = @transform_4, window_bounds = array<i64: 1>}, {pipeline_mode = #tpu.pipeline_mode<synchronous>, transform_indices = @transform_5, window_bounds = array<i64: 16, 32>}, {pipeline_mode = #tpu.pipeline_mode<synchronous>, transform_indices = @transform_6, window_bounds = array<i64: 1, 32>}, {pipeline_mode = #tpu.pipeline_mode<synchronous>, transform_indices = @transform_7, window_bounds = array<i64: 32, 128>}, {pipeline_mode = #tpu.pipeline_mode<synchronous>, transform_indices = @transform_8, window_bounds = array<i64: 1, 128>}, {transform_indices = @transform_9, window_bounds = array<i64: 8, 128>}]} {
    %c0 = arith.constant 0 : index
    %c0_0 = arith.constant 0 : index
    %0 = vector.load %arg1[%c0, %c0_0] : memref<64x16xbf16, #tpu.memory_space<vmem>>, vector<64x16xbf16>
    %c0_1 = arith.constant 0 : index
    %c0_2 = arith.constant 0 : index
    %1 = vector.load %arg2[%c0_1, %c0_2] : memref<16x16xbf16, #tpu.memory_space<vmem>>, vector<16x16xbf16>
    %cst = arith.constant dense<0.000000e+00> : vector<64x16xf32>
    %2 = tpu.matmul %0, %1, %cst {dimension_numbers = #tpu.dot_dimension_numbers<[1], [0], [0], [1], [0, 0, 1, 1], [], []>} : vector<64x16xbf16>, vector<16x16xbf16>, vector<64x16xf32> -> vector<64x16xf32>
    %c0_3 = arith.constant 0 : index
    %c0_4 = arith.constant 0 : index
    %3 = vector.load %arg3[%c0_3, %c0_4] : memref<1x16xf32, #tpu.memory_space<vmem>>, vector<1x16xf32>
    %4 = vector.broadcast %3 : vector<1x16xf32> to vector<64x16xf32>
    %5 = arith.addf %2, %4 : vector<64x16xf32>
    %cst_5 = arith.constant 0.00999999977 : f32
    %6 = vector.broadcast %cst_5 : f32 to vector<64x16xf32>
    %7 = arith.mulf %6, %5 : vector<64x16xf32>
    %8 = arith.maximumf %5, %7 : vector<64x16xf32>
    %c0_6 = arith.constant 0 : index
    %c0_7 = arith.constant 0 : index
    %9 = vector.load %arg4[%c0_6, %c0_7] : memref<1x16xf32, #tpu.memory_space<vmem>>, vector<1x16xf32>
    %10 = vector.broadcast %9 : vector<1x16xf32> to vector<64x16xf32>
    %11 = arith.mulf %8, %10 : vector<64x16xf32>
    %cst_8 = arith.constant dense<0.000000e+00> : vector<64xf32>
    %12 = vector.multi_reduction <add>, %11, %cst_8 [1] : vector<64x16xf32> to vector<64xf32>
    %13 = vector.shape_cast %12 : vector<64xf32> to vector<64x1xf32>
    %c0_9 = arith.constant 0 : index
    %14 = memref.load %arg5[%c0_9] : memref<1xf32, #tpu.memory_space<smem>>
    %15 = vector.broadcast %14 : f32 to vector<64x1xf32>
    %16 = arith.addf %13, %15 : vector<64x1xf32>
    %17 = tpu.iota {dimensions = array<i32: 0>} : vector<64x8xi32>
    %18 = tpu.iota {dimensions = array<i32: 1>} : vector<64x8xi32>
    %c8_i32 = arith.constant 8 : i32
    %19 = vector.broadcast %c8_i32 : i32 to vector<64x8xi32>
    %20 = arith.muli %18, %19 : vector<64x8xi32>
    %21 = arith.cmpi sge, %17, %20 : vector<64x8xi32>
    %c1_i32 = arith.constant 1 : i32
    %22 = vector.broadcast %c1_i32 : i32 to vector<64x8xi32>
    %23 = arith.addi %18, %22 : vector<64x8xi32>
    %c8_i32_10 = arith.constant 8 : i32
    %24 = vector.broadcast %c8_i32_10 : i32 to vector<64x8xi32>
    %25 = arith.muli %23, %24 : vector<64x8xi32>
    %26 = arith.cmpi slt, %17, %25 : vector<64x8xi32>
    %27 = arith.andi %21, %26 : vector<64x8xi1>
    %28 = tpu.iota {dimensions = array<i32: 0>} : vector<8x64xi32>
    %29 = tpu.iota {dimensions = array<i32: 1>} : vector<8x64xi32>
    %c8_i32_11 = arith.constant 8 : i32
    %30 = vector.broadcast %c8_i32_11 : i32 to vector<8x64xi32>
    %31 = arith.muli %28, %30 : vector<8x64xi32>
    %32 = arith.cmpi sge, %29, %31 : vector<8x64xi32>
    %c1_i32_12 = arith.constant 1 : i32
    %33 = vector.broadcast %c1_i32_12 : i32 to vector<8x64xi32>
    %34 = arith.addi %28, %33 : vector<8x64xi32>
    %c8_i32_13 = arith.constant 8 : i32
    %35 = vector.broadcast %c8_i32_13 : i32 to vector<8x64xi32>
    %36 = arith.muli %34, %35 : vector<8x64xi32>
    %37 = arith.cmpi slt, %29, %36 : vector<8x64xi32>
    %38 = arith.andi %32, %37 : vector<8x64xi1>
    %cst_14 = arith.constant -1.000000e+30 : f32
    %39 = vector.shape_cast %16 : vector<64x1xf32> to vector<64x1xf32>
    %40 = vector.broadcast %39 : vector<64x1xf32> to vector<64x8xf32>
    %41 = vector.broadcast %cst_14 : f32 to vector<64x8xf32>
    %42 = arith.select %27, %40, %41 : vector<64x8xi1>, vector<64x8xf32>
    %cst_15 = arith.constant dense<0xFF800000> : vector<8xf32>
    %43 = vector.multi_reduction <maximumf>, %42, %cst_15 [0] : vector<64x8xf32> to vector<8xf32>
    %44 = vector.shape_cast %43 : vector<8xf32> to vector<1x8xf32>
    %cst_16 = arith.constant 0.000000e+00 : f32
    %45 = vector.shape_cast %44 : vector<1x8xf32> to vector<1x8xf32>
    %46 = vector.broadcast %45 : vector<1x8xf32> to vector<64x8xf32>
    %47 = vector.broadcast %cst_16 : f32 to vector<64x8xf32>
    %48 = arith.select %27, %46, %47 : vector<64x8xi1>, vector<64x8xf32>
    %cst_17 = arith.constant dense<0.000000e+00> : vector<64xf32>
    %49 = vector.multi_reduction <add>, %48, %cst_17 [1] : vector<64x8xf32> to vector<64xf32>
    %50 = vector.shape_cast %49 : vector<64xf32> to vector<64x1xf32>
    %51 = arith.subf %16, %50 : vector<64x1xf32>
    %52 = math.exp %51 : vector<64x1xf32>
    %53 = arith.extui %38 : vector<8x64xi1> to vector<8x64xi32>
    %54 = arith.sitofp %53 : vector<8x64xi32> to vector<8x64xf32>
    %55 = arith.truncf %54 : vector<8x64xf32> to vector<8x64xbf16>
    %56 = arith.truncf %52 : vector<64x1xf32> to vector<64x1xbf16>
    %cst_18 = arith.constant dense<0.000000e+00> : vector<8x1xf32>
    %57 = tpu.matmul %55, %56, %cst_18 {dimension_numbers = #tpu.dot_dimension_numbers<[1], [0], [0], [1], [0, 0, 1, 1], [], []>} : vector<8x64xbf16>, vector<64x1xbf16>, vector<8x1xf32> -> vector<8x1xf32>
    %58 = vector.broadcast %56 : vector<64x1xbf16> to vector<64x16xbf16>
    %59 = arith.mulf %58, %0 : vector<64x16xbf16>
    %cst_19 = arith.constant dense<0.000000e+00> : vector<8x16xf32>
    %60 = tpu.matmul %55, %59, %cst_19 {dimension_numbers = #tpu.dot_dimension_numbers<[1], [0], [0], [1], [0, 0, 1, 1], [], []>} : vector<8x64xbf16>, vector<64x16xbf16>, vector<8x16xf32> -> vector<8x16xf32>
    %61 = tpu.reciprocal %57 : vector<8x1xf32> -> vector<8x1xf32>
    %62 = vector.broadcast %61 : vector<8x1xf32> to vector<8x16xf32>
    %63 = arith.mulf %60, %62 : vector<8x16xf32>
    %64 = arith.truncf %63 : vector<8x16xf32> to vector<8x16xbf16>
    %c0_20 = arith.constant 0 : index
    %c0_21 = arith.constant 0 : index
    %65 = vector.load %arg6[%c0_20, %c0_21] : memref<16x32xbf16, #tpu.memory_space<vmem>>, vector<16x32xbf16>
    %cst_22 = arith.constant dense<0.000000e+00> : vector<8x32xf32>
    %66 = tpu.matmul %64, %65, %cst_22 {dimension_numbers = #tpu.dot_dimension_numbers<[1], [0], [0], [1], [0, 0, 1, 1], [], []>} : vector<8x16xbf16>, vector<16x32xbf16>, vector<8x32xf32> -> vector<8x32xf32>
    %c0_23 = arith.constant 0 : index
    %c0_24 = arith.constant 0 : index
    %67 = vector.load %arg7[%c0_23, %c0_24] : memref<1x32xf32, #tpu.memory_space<vmem>>, vector<1x32xf32>
    %68 = vector.broadcast %67 : vector<1x32xf32> to vector<8x32xf32>
    %69 = arith.addf %66, %68 : vector<8x32xf32>
    %70 = math.tanh %69 : vector<8x32xf32>
    %71 = arith.truncf %70 : vector<8x32xf32> to vector<8x32xbf16>
    %c0_25 = arith.constant 0 : index
    %c0_26 = arith.constant 0 : index
    %72 = vector.load %arg8[%c0_25, %c0_26] : memref<32x128xbf16, #tpu.memory_space<vmem>>, vector<32x128xbf16>
    %cst_27 = arith.constant dense<0.000000e+00> : vector<8x128xf32>
    %73 = tpu.matmul %71, %72, %cst_27 {dimension_numbers = #tpu.dot_dimension_numbers<[1], [0], [0], [1], [0, 0, 1, 1], [], []>} : vector<8x32xbf16>, vector<32x128xbf16>, vector<8x128xf32> -> vector<8x128xf32>
    %c0_28 = arith.constant 0 : index
    %c0_29 = arith.constant 0 : index
    %74 = vector.load %arg9[%c0_28, %c0_29] : memref<1x128xf32, #tpu.memory_space<vmem>>, vector<1x128xf32>
    %75 = vector.broadcast %74 : vector<1x128xf32> to vector<8x128xf32>
    %76 = arith.addf %73, %75 : vector<8x128xf32>
    %c0_30 = arith.constant 0 : index
    %c0_31 = arith.constant 0 : index
    %77 = vector.load %arg10[%c0_30, %c0_31] : memref<8x128xf32, #tpu.memory_space<vmem>>, vector<8x128xf32>
    tpu.vector_store %arg10[%c0_30, %c0_31], %76 {strides = array<i32>} : memref<8x128xf32, #tpu.memory_space<vmem>>, vector<8x128xf32>,
    return
  }
  func.func @transform_0(%arg0: i32) -> (i32, i32) {
    %c0_i32 = arith.constant 0 : i32
    %c0_i32_0 = arith.constant 0 : i32
    return %arg0, %c0_i32 : i32, i32
  }
  func.func @transform_1(%arg0: i32) -> (i32, i32) {
    %c0_i32 = arith.constant 0 : i32
    %c0_i32_0 = arith.constant 0 : i32
    %c0_i32_1 = arith.constant 0 : i32
    return %c0_i32, %c0_i32_0 : i32, i32
  }
  func.func @transform_2(%arg0: i32) -> (i32, i32) {
    %c0_i32 = arith.constant 0 : i32
    %c0_i32_0 = arith.constant 0 : i32
    %c0_i32_1 = arith.constant 0 : i32
    return %c0_i32, %c0_i32_0 : i32, i32
  }
  func.func @transform_3(%arg0: i32) -> (i32, i32) {
    %c0_i32 = arith.constant 0 : i32
    %c0_i32_0 = arith.constant 0 : i32
    %c0_i32_1 = arith.constant 0 : i32
    return %c0_i32, %c0_i32_0 : i32, i32
  }
  func.func @transform_4(%arg0: i32) -> i32 {
    %c0_i32 = arith.constant 0 : i32
    %c0_i32_0 = arith.constant 0 : i32
    return %c0_i32 : i32
  }
  func.func @transform_5(%arg0: i32) -> (i32, i32) {
    %c0_i32 = arith.constant 0 : i32
    %c0_i32_0 = arith.constant 0 : i32
    %c0_i32_1 = arith.constant 0 : i32
    return %c0_i32, %c0_i32_0 : i32, i32
  }
  func.func @transform_6(%arg0: i32) -> (i32, i32) {
    %c0_i32 = arith.constant 0 : i32
    %c0_i32_0 = arith.constant 0 : i32
    %c0_i32_1 = arith.constant 0 : i32
    return %c0_i32, %c0_i32_0 : i32, i32
  }
  func.func @transform_7(%arg0: i32) -> (i32, i32) {
    %c0_i32 = arith.constant 0 : i32
    %c0_i32_0 = arith.constant 0 : i32
    %c0_i32_1 = arith.constant 0 : i32
    return %c0_i32, %c0_i32_0 : i32, i32
  }
  func.func @transform_8(%arg0: i32) -> (i32, i32) {
    %c0_i32 = arith.constant 0 : i32
    %c0_i32_0 = arith.constant 0 : i32
    %c0_i32_1 = arith.constant 0 : i32
    return %c0_i32, %c0_i32_0 : i32, i32
  }
  func.func @transform_9(%arg0: i32) -> (i32, i32) {
    %c0_i32 = arith.constant 0 : i32
    %c0_i32_0 = arith.constant 0 : i32
    return %arg0, %c0_i32 : i32, i32
  }
}

</mosaic_0001>

<llo_original>
// kernel: tpu_custom_call.1
$region0: #{tpu_custom_call.1}
  #allocation0 [shape = 'u32[]', space=smem, size = 0x4, offset = 0x4, fixed_abs, tag = 'smem constant byte address 0x4 - core index']
  #allocation1 [shape = 'u32[144,128]{1,0:T(1,128)}', space=vmem, size = 0x12000, scoped, tag = 'internal scratch']
  #allocation2 [shape = 'f32[1]{0:T(128)S(6)}', space=smem, size = 0x200, scoped, tag = 'scoped memory for tpu_custom_call.1']
  %s0 = inlined_call_operand.hbm [shape: bf16[128,16], index: 0, kind: input, shape index: {}]
  %s1 = inlined_call_operand.hbm [shape: bf16[16,16], index: 1, kind: input, shape index: {}]
  %s2 = inlined_call_operand.hbm [shape: f32[1,16], index: 2, kind: input, shape index: {}]
  %s3 = inlined_call_operand.hbm [shape: f32[1,16], index: 3, kind: input, shape index: {}]
  %s4 = inlined_call_operand.<no memory space> [shape: f32[1], index: 4, kind: input, shape index: {}]
  %s5 = inlined_call_operand.hbm [shape: bf16[16,32], index: 5, kind: input, shape index: {}]
  %s6 = inlined_call_operand.hbm [shape: f32[1,32], index: 6, kind: input, shape index: {}]
  %s7 = inlined_call_operand.hbm [shape: bf16[32,128], index: 7, kind: input, shape index: {}]
  %s8 = inlined_call_operand.hbm [shape: f32[1,128], index: 8, kind: input, shape index: {}]
  %s9 = inlined_call_operand.hbm [shape: f32[16,128], index: 9, kind: output, shape index: {}]
  %s10 = sld [smem:[#allocation0]]
  $region101: #{tpu_custom_call.1} parent=0
    _
  %s12 = ssub.s32 1, %s10
  %s13 = scalar_select 0, %s12, %s10
  %14 = sst [smem:[#allocation2]] %s4
  $region1: #{tpu_custom_call.1} parent=0
    #allocation3 [shape = 'u8[32768]{0}', space=vmem, size = 0x8000, scoped, tag = 'input window, operand 0']
    #allocation4 [shape = 's32[2]{0}', space=sflag, size = 0x8, scoped, tag = 'scoped memory for tpu_custom_call.1']
    #allocation5 [shape = 's32[2]{0}', space=sflag, size = 0x8, scoped, tag = 'scoped memory for tpu_custom_call.1']
    #allocation6 [shape = 'u8[4096]{0}', space=vmem, size = 0x1000, scoped, tag = 'input window, operand 1, single buffered']
    #allocation7 [shape = 's32[1]{0}', space=sflag, size = 0x4, scoped, tag = 'scoped memory for tpu_custom_call.1']
    #allocation8 [shape = 'u8[512]{0}', space=vmem, size = 0x400, scoped, tag = 'input window, operand 2, single buffered']
    #allocation9 [shape = 'u8[512]{0}', space=vmem, size = 0x400, scoped, tag = 'input window, operand 3, single buffered']
    #allocation10 [shape = 's32[1]{0}', space=sflag, size = 0x4, scoped, tag = 'scoped memory for tpu_custom_call.1']
    #allocation11 [shape = 'u8[4096]{0}', space=vmem, size = 0x1000, scoped, tag = 'input window, operand 5, single buffered']
    #allocation12 [shape = 'u8[512]{0}', space=vmem, size = 0x400, scoped, tag = 'input window, operand 6, single buffered']
    #allocation13 [shape = 's32[1]{0}', space=sflag, size = 0x4, scoped, tag = 'scoped memory for tpu_custom_call.1']
    #allocation14 [shape = 'u8[8192]{0}', space=vmem, size = 0x2000, scoped, tag = 'input window, operand 7, single buffered']
    #allocation15 [shape = 'u8[512]{0}', space=vmem, size = 0x400, scoped, tag = 'input window, operand 8, single buffered']
    #allocation16 [shape = 's32[1]{0}', space=sflag, size = 0x4, scoped, tag = 'scoped memory for tpu_custom_call.1']
    #allocation17 [shape = 'u8[8192]{0}', space=vmem, size = 0x2000, scoped, tag = 'output window, operand 0']
    %15 = vsyncpa [#allocation4], 0
    %s16 = scalar_lea.sflag [#allocation4], 1
    %17 = vsyncpa %s16, 0
    %18 = vsyncpa [#allocation7], 0
    %19 = vsyncpa [#allocation10], 0
    %20 = vsyncpa [#allocation13], 0
    %21 = vsyncpa [#allocation16], 0
    %22 = vsyncpa [#allocation5], 0
    %s23 = scalar_lea.sflag [#allocation5], 1
    %24 = vsyncpa %s23, 0
    loop: start=0, step=1, limit=4
    $region2: #{tpu_custom_call.1} parent=1 // loop_pre_header
      _
    $region3: #{tpu_custom_call.1} parent=1 // loop_header
      %s26 = sphi 0, %s30
      %p27 = scmp.ge.s32.totalorder %s26, 4
      %s36 = sphi 0, %s38
      %s39 = sphi 0, %s36
      %s40 = sphi 0, %s39
      %s56 = sphi 0, %s40
      %s60 = sphi 0, %s60
      %s62 = sphi 0, %s60
      %s63 = sphi 0, %s62
      %s77 = sphi 0, %s63
      %s81 = sphi 0, %s81
      %s83 = sphi 0, %s81
      %s84 = sphi 0, %s83
      %s98 = sphi 0, %s84
      %s102 = sphi 0, %s102
      %s104 = sphi 0, %s102
      %s105 = sphi 0, %s104
      %s119 = sphi 0, %s105
      %s123 = sphi 0, %s123
      %s125 = sphi 0, %s123
      %s126 = sphi 0, %s125
      %s140 = sphi 0, %s126
      %s144 = sphi 0, %s144
      %s146 = sphi 0, %s144
      %s147 = sphi 0, %s146
      %s161 = sphi 0, %s147
      %s165 = sphi 0, %s165
      %s167 = sphi 0, %s165
      %s168 = sphi 0, %s167
      %s182 = sphi 0, %s168
      %s186 = sphi 0, %s186
      %s188 = sphi 0, %s186
      %s189 = sphi 0, %s188
      %s203 = sphi 0, %s189
      %s207 = sphi 0, %s207
      %s209 = sphi 0, %s207
      %s210 = sphi 0, %s209
      %s224 = sphi 0, %s210
      %s230 = sphi 0, %s232
      %s233 = sphi 0, %s230
      %s234 = sphi 0, %s233
      %s250 = sphi 0, %s234
    $region4: #{tpu_custom_call.1} parent=1 // loop_header_branch
      %29 = sbr.rel (%p27) target = $region8
    $region5: #{tpu_custom_call.1} parent=1 // loop_body
      %s31 = ssub.s32 %s26, 1
      %s32 = ssub.s32 %s26, 2
      %s33 = sadd.s32 %s26, 1
      %s34 = ssub.s32 %s26, %s33
      %p35 = scmp.eq.s32.totalorder %s34, 0
      %s37 = sadd.s32 %s36, 1
      %s38 = scalar_select %p35, %s36, %s37
      %p41 = pneg %p35
      %p42 = scmp.eq.s32.totalorder %s26, 1
      %p43 = por %p41, %p42
      %p44 = scmp.ne.s32.totalorder %s36, %s39
      %p45 = scmp.eq.s32.totalorder %s26, 0
      %p46 = por %p44, %p45
      %p47 = scmp.ne.s32.totalorder %s36, %s39
      %p48 = scmp.eq.s32.totalorder %s31, 1
      %p49 = por %p47, %p48
      %p50 = scmp.ne.s32.totalorder %s39, %s40
      %p51 = scmp.eq.s32.totalorder %s31, 0
      %p52 = por %p50, %p51
      %p53 = scmp.ne.s32.totalorder %s39, %s40
      %p54 = scmp.eq.s32.totalorder %s32, 1
      %p55 = por %p53, %p54
      %p57 = scmp.ne.s32.totalorder %s40, %s56
      %p58 = scmp.eq.s32.totalorder %s32, 0
      %p59 = por %p57, %p58
      %s61 = sadd.s32 %s60, 1
      %p64 = scmp.eq.s32.totalorder %s26, 1
      %p65 = scmp.ne.s32.totalorder %s60, %s62
      %p66 = scmp.eq.s32.totalorder %s26, 0
      %p67 = por %p65, %p66
      %p68 = scmp.ne.s32.totalorder %s60, %s62
      %p69 = scmp.eq.s32.totalorder %s31, 1
      %p70 = por %p68, %p69
      %p71 = scmp.ne.s32.totalorder %s62, %s63
      %p72 = scmp.eq.s32.totalorder %s31, 0
      %p73 = por %p71, %p72
      %p74 = scmp.ne.s32.totalorder %s62, %s63
      %p75 = scmp.eq.s32.totalorder %s32, 1
      %p76 = por %p74, %p75
      %p78 = scmp.ne.s32.totalorder %s63, %s77
      %p79 = scmp.eq.s32.totalorder %s32, 0
      %p80 = por %p78, %p79
      %s82 = sadd.s32 %s81, 1
      %p85 = scmp.eq.s32.totalorder %s26, 1
      %p86 = scmp.ne.s32.totalorder %s81, %s83
      %p87 = scmp.eq.s32.totalorder %s26, 0
      %p88 = por %p86, %p87
      %p89 = scmp.ne.s32.totalorder %s81, %s83
      %p90 = scmp.eq.s32.totalorder %s31, 1
      %p91 = por %p89, %p90
      %p92 = scmp.ne.s32.totalorder %s83, %s84
      %p93 = scmp.eq.s32.totalorder %s31, 0
      %p94 = por %p92, %p93
      %p95 = scmp.ne.s32.totalorder %s83, %s84
      %p96 = scmp.eq.s32.totalorder %s32, 1
      %p97 = por %p95, %p96
      %p99 = scmp.ne.s32.totalorder %s84, %s98
      %p100 = scmp.eq.s32.totalorder %s32, 0
      %p101 = por %p99, %p100
      %s103 = sadd.s32 %s102, 1
      %p106 = scmp.eq.s32.totalorder %s26, 1
      %p107 = scmp.ne.s32.totalorder %s102, %s104
      %p108 = scmp.eq.s32.totalorder %s26, 0
      %p109 = por %p107, %p108
      %p110 = scmp.ne.s32.totalorder %s102, %s104
      %p111 = scmp.eq.s32.totalorder %s31, 1
      %p112 = por %p110, %p111
      %p113 = scmp.ne.s32.totalorder %s104, %s105
      %p114 = scmp.eq.s32.totalorder %s31, 0
      %p115 = por %p113, %p114
      %p116 = scmp.ne.s32.totalorder %s104, %s105
      %p117 = scmp.eq.s32.totalorder %s32, 1
      %p118 = por %p116, %p117
      %p120 = scmp.ne.s32.totalorder %s105, %s119
      %p121 = scmp.eq.s32.totalorder %s32, 0
      %p122 = por %p120, %p121
      %s124 = sadd.s32 %s123, 1
      %p127 = scmp.eq.s32.totalorder %s26, 1
      %p128 = scmp.ne.s32.totalorder %s123, %s125
      %p129 = scmp.eq.s32.totalorder %s26, 0
      %p130 = por %p128, %p129
      %p131 = scmp.ne.s32.totalorder %s123, %s125
      %p132 = scmp.eq.s32.totalorder %s31, 1
      %p133 = por %p131, %p132
      %p134 = scmp.ne.s32.totalorder %s125, %s126
      %p135 = scmp.eq.s32.totalorder %s31, 0
      %p136 = por %p134, %p135
      %p137 = scmp.ne.s32.totalorder %s125, %s126
      %p138 = scmp.eq.s32.totalorder %s32, 1
      %p139 = por %p137, %p138
      %p141 = scmp.ne.s32.totalorder %s126, %s140
      %p142 = scmp.eq.s32.totalorder %s32, 0
      %p143 = por %p141, %p142
      %s145 = sadd.s32 %s144, 1
      %p148 = scmp.eq.s32.totalorder %s26, 1
      %p149 = scmp.ne.s32.totalorder %s144, %s146
      %p150 = scmp.eq.s32.totalorder %s26, 0
      %p151 = por %p149, %p150
      %p152 = scmp.ne.s32.totalorder %s144, %s146
      %p153 = scmp.eq.s32.totalorder %s31, 1
      %p154 = por %p152, %p153
      %p155 = scmp.ne.s32.totalorder %s146, %s147
      %p156 = scmp.eq.s32.totalorder %s31, 0
      %p157 = por %p155, %p156
      %p158 = scmp.ne.s32.totalorder %s146, %s147
      %p159 = scmp.eq.s32.totalorder %s32, 1
      %p160 = por %p158, %p159
      %p162 = scmp.ne.s32.totalorder %s147, %s161
      %p163 = scmp.eq.s32.totalorder %s32, 0
      %p164 = por %p162, %p163
      %s166 = sadd.s32 %s165, 1
      %p169 = scmp.eq.s32.totalorder %s26, 1
      %p170 = scmp.ne.s32.totalorder %s165, %s167
      %p171 = scmp.eq.s32.totalorder %s26, 0
      %p172 = por %p170, %p171
      %p173 = scmp.ne.s32.totalorder %s165, %s167
      %p174 = scmp.eq.s32.totalorder %s31, 1
      %p175 = por %p173, %p174
      %p176 = scmp.ne.s32.totalorder %s167, %s168
      %p177 = scmp.eq.s32.totalorder %s31, 0
      %p178 = por %p176, %p177
      %p179 = scmp.ne.s32.totalorder %s167, %s168
      %p180 = scmp.eq.s32.totalorder %s32, 1
      %p181 = por %p179, %p180
      %p183 = scmp.ne.s32.totalorder %s168, %s182
      %p184 = scmp.eq.s32.totalorder %s32, 0
      %p185 = por %p183, %p184
      %s187 = sadd.s32 %s186, 1
      %p190 = scmp.eq.s32.totalorder %s26, 1
      %p191 = scmp.ne.s32.totalorder %s186, %s188
      %p192 = scmp.eq.s32.totalorder %s26, 0
      %p193 = por %p191, %p192
      %p194 = scmp.ne.s32.totalorder %s186, %s188
      %p195 = scmp.eq.s32.totalorder %s31, 1
      %p196 = por %p194, %p195
      %p197 = scmp.ne.s32.totalorder %s188, %s189
      %p198 = scmp.eq.s32.totalorder %s31, 0
      %p199 = por %p197, %p198
      %p200 = scmp.ne.s32.totalorder %s188, %s189
      %p201 = scmp.eq.s32.totalorder %s32, 1
      %p202 = por %p200, %p201
      %p204 = scmp.ne.s32.totalorder %s189, %s203
      %p205 = scmp.eq.s32.totalorder %s32, 0
      %p206 = por %p204, %p205
      %s208 = sadd.s32 %s207, 1
      %p211 = scmp.eq.s32.totalorder %s26, 1
      %p212 = scmp.ne.s32.totalorder %s207, %s209
      %p213 = scmp.eq.s32.totalorder %s26, 0
      %p214 = por %p212, %p213
      %p215 = scmp.ne.s32.totalorder %s207, %s209
      %p216 = scmp.eq.s32.totalorder %s31, 1
      %p217 = por %p215, %p216
      %p218 = scmp.ne.s32.totalorder %s209, %s210
      %p219 = scmp.eq.s32.totalorder %s31, 0
      %p220 = por %p218, %p219
      %p221 = scmp.ne.s32.totalorder %s209, %s210
      %p222 = scmp.eq.s32.totalorder %s32, 1
      %p223 = por %p221, %p222
      %p225 = scmp.ne.s32.totalorder %s210, %s224
      %p226 = scmp.eq.s32.totalorder %s32, 0
      %p227 = por %p225, %p226
      %s228 = ssub.s32 %s26, %s33
      %p229 = scmp.eq.s32.totalorder %s228, 0
      %s231 = sadd.s32 %s230, 1
      %s232 = scalar_select %p229, %s230, %s231
      %p235 = pneg %p229
      %p236 = scmp.eq.s32.totalorder %s26, 1
      %p237 = por %p235, %p236
      %p238 = scmp.ne.s32.totalorder %s230, %s233
      %p239 = scmp.eq.s32.totalorder %s26, 0
      %p240 = por %p238, %p239
      %p241 = scmp.ne.s32.totalorder %s230, %s233
      %p242 = scmp.eq.s32.totalorder %s31, 1
      %p243 = por %p241, %p242
      %p244 = scmp.ne.s32.totalorder %s233, %s234
      %p245 = scmp.eq.s32.totalorder %s31, 0
      %p246 = por %p244, %p245
      %p247 = scmp.ne.s32.totalorder %s233, %s234
      %p248 = scmp.eq.s32.totalorder %s32, 1
      %p249 = por %p247, %p248
      %p251 = scmp.ne.s32.totalorder %s234, %s250
      %p252 = scmp.eq.s32.totalorder %s32, 0
      %p253 = por %p251, %p252
      %p254 = scmp.le.s32.totalorder 1, %s26
      %p255 = scmp.lt.s32.totalorder %s26, 3
      %p256 = pnand %p254, %p255
      %p257 = pneg %p256
      // Predicated region
      $region9: #{tpu_custom_call.1} parent=5 // pred_check
        _
      $region10: #{tpu_custom_call.1} parent=5 // pred_check_branch
        %259 = sbr.rel (%p256) target = $region12
      $region11: #{tpu_custom_call.1} parent=5 // pred_region
        %s260 = ssub.s32 %s26, 1
        // Predicated region
        $region13: #{tpu_custom_call.1} parent=11 // pred_check
          %p261 = pneg %p73
        $region14: #{tpu_custom_call.1} parent=11 // pred_check_branch
          %263 = sbr.rel (%p261) target = $region16
        $region15: #{tpu_custom_call.1} parent=11 // pred_region
          %s265 = ssub.s32 128, 128
          %266 = vsyncadd [#allocation7], %s265
          %s267 = sshll.u32 [#allocation6], 4
          %s268 = int_to_ptr.vmem [resolvable:$true] %s267
          %273 = dma.hbm_to_vmem [thread:$0]  %s1, 128, %s268, [#allocation7], 64, 64, 4
        $region16: #{tpu_custom_call.1} parent=11 // pred_fallthru
          _
        // Predicated region
        $region17: #{tpu_custom_call.1} parent=11 // pred_check
          %p274 = pneg %p94
        $region18: #{tpu_custom_call.1} parent=11 // pred_check_branch
          %276 = sbr.rel (%p274) target = $region20
        $region19: #{tpu_custom_call.1} parent=11 // pred_region
          %s278 = ssub.s32 16, 16
          %279 = vsyncadd [#allocation7], %s278
          %s281 = sshll.u32 [#allocation8], 4
          %s282 = int_to_ptr.vmem [resolvable:$true] %s281
          %284 = dma.hbm_to_vmem [thread:$0]  %s2, 16, %s282, [#allocation7]
        $region20: #{tpu_custom_call.1} parent=11 // pred_fallthru
          _
        // Predicated region
        $region21: #{tpu_custom_call.1} parent=11 // pred_check
          %p285 = pneg %p115
        $region22: #{tpu_custom_call.1} parent=11 // pred_check_branch
          %287 = sbr.rel (%p285) target = $region24
        $region23: #{tpu_custom_call.1} parent=11 // pred_region
          %s289 = ssub.s32 16, 16
          %290 = vsyncadd [#allocation10], %s289
          %s292 = sshll.u32 [#allocation9], 4
          %s293 = int_to_ptr.vmem [resolvable:$true] %s292
          %295 = dma.hbm_to_vmem [thread:$0]  %s3, 16, %s293, [#allocation10]
        $region24: #{tpu_custom_call.1} parent=11 // pred_fallthru
          _
        // Predicated region
        $region25: #{tpu_custom_call.1} parent=11 // pred_check
          %p296 = pneg %p136
        $region26: #{tpu_custom_call.1} parent=11 // pred_check_branch
          %298 = sbr.rel (%p296) target = $region28
        $region27: #{tpu_custom_call.1} parent=11 // pred_region
          _
        $region28: #{tpu_custom_call.1} parent=11 // pred_fallthru
          _
        // Predicated region
        $region29: #{tpu_custom_call.1} parent=11 // pred_check
          %p299 = pneg %p157
        $region30: #{tpu_custom_call.1} parent=11 // pred_check_branch
          %301 = sbr.rel (%p299) target = $region32
        $region31: #{tpu_custom_call.1} parent=11 // pred_region
          %s303 = ssub.s32 128, 128
          %304 = vsyncadd [#allocation10], %s303
          %s305 = sshll.u32 [#allocation11], 4
          %s306 = int_to_ptr.vmem [resolvable:$true] %s305
          %311 = dma.hbm_to_vmem [thread:$0]  %s5, 128, %s306, [#allocation10], 64, 64, 4
        $region32: #{tpu_custom_call.1} parent=11 // pred_fallthru
          _
        // Predicated region
        $region33: #{tpu_custom_call.1} parent=11 // pred_check
          %p312 = pneg %p178
        $region34: #{tpu_custom_call.1} parent=11 // pred_check_branch
          %314 = sbr.rel (%p312) target = $region36
        $region35: #{tpu_custom_call.1} parent=11 // pred_region
          %s316 = ssub.s32 16, 16
          %317 = vsyncadd [#allocation13], %s316
          %s319 = sshll.u32 [#allocation12], 4
          %s320 = int_to_ptr.vmem [resolvable:$true] %s319
          %322 = dma.hbm_to_vmem [thread:$0]  %s6, 16, %s320, [#allocation13]
        $region36: #{tpu_custom_call.1} parent=11 // pred_fallthru
          _
        // Predicated region
        $region37: #{tpu_custom_call.1} parent=11 // pred_check
          %p323 = pneg %p199
        $region38: #{tpu_custom_call.1} parent=11 // pred_check_branch
          %325 = sbr.rel (%p323) target = $region40
        $region39: #{tpu_custom_call.1} parent=11 // pred_region
          %s327 = ssub.s32 256, 256
          %328 = vsyncadd [#allocation13], %s327
          %s329 = sshll.u32 [#allocation14], 4
          %s330 = int_to_ptr.vmem [resolvable:$true] %s329
          %335 = dma.hbm_to_vmem [thread:$0]  %s7, 256, %s330, [#allocation13], 64, 64, 4
        $region40: #{tpu_custom_call.1} parent=11 // pred_fallthru
          _
        // Predicated region
        $region41: #{tpu_custom_call.1} parent=11 // pred_check
          %p336 = pneg %p220
        $region42: #{tpu_custom_call.1} parent=11 // pred_check_branch
          %338 = sbr.rel (%p336) target = $region44
        $region43: #{tpu_custom_call.1} parent=11 // pred_region
          %s340 = ssub.s32 16, 16
          %341 = vsyncadd [#allocation16], %s340
          %s343 = sshll.u32 [#allocation15], 4
          %s344 = int_to_ptr.vmem [resolvable:$true] %s343
          %346 = dma.hbm_to_vmem [thread:$0]  %s8, 16, %s344, [#allocation16]
        $region44: #{tpu_custom_call.1} parent=11 // pred_fallthru
          _
      $region12: #{tpu_custom_call.1} parent=5 // pred_fallthru
        _
      %p347 = scmp.lt.s32.totalorder %s26, 2
      // Predicated region
      $region45: #{tpu_custom_call.1} parent=5 // pred_check
        %p348 = pneg %p347
      $region46: #{tpu_custom_call.1} parent=5 // pred_check_branch
        %350 = sbr.rel (%p348) target = $region48
      $region47: #{tpu_custom_call.1} parent=5 // pred_region
        // Predicated region
        $region49: #{tpu_custom_call.1} parent=47 // pred_check
          %p351 = pneg %p46
        $region50: #{tpu_custom_call.1} parent=47 // pred_check_branch
          %353 = sbr.rel (%p351) target = $region52
        $region51: #{tpu_custom_call.1} parent=47 // pred_region
          %s354 = sand.u32 %s36, 1
          %s355 = scalar_lea.sflag [#allocation4], %s354
          %s356 = sand.u32 %s36, 1
          %s357 = smul.addr %s356, 32
          %s358 = scalar_lea.vmem [#allocation3], %s357
          %s359 = smul.u32 8, %s26
          %s361 = ssub.s32 512, 512
          %362 = vsyncadd %s355, %s361
          %s363 = smul.addr %s359, 64
          %s364 = scalar_lea.hbm %s0, %s363
          %s365 = sshll.u32 %s358, 4
          %s366 = int_to_ptr.vmem [resolvable:$true] %s365
          %371 = dma.hbm_to_vmem [thread:$0]  %s364, 512, %s366, %s355, 64, 64, 4
        $region52: #{tpu_custom_call.1} parent=47 // pred_fallthru
          _
      $region48: #{tpu_custom_call.1} parent=5 // pred_fallthru
        _
      %p372 = scmp.le.s32.totalorder 1, %s26
      %p373 = scmp.lt.s32.totalorder %s26, 3
      %p374 = pnand %p372, %p373
      %p375 = pneg %p374
      // Predicated region
      $region53: #{tpu_custom_call.1} parent=5 // pred_check
        _
      $region54: #{tpu_custom_call.1} parent=5 // pred_check_branch
        %377 = sbr.rel (%p374) target = $region56
      $region55: #{tpu_custom_call.1} parent=5 // pred_region
        %s378 = ssub.s32 %s26, 1
        %s379 = sand.u32 %s39, 1
        %s380 = scalar_lea.sflag [#allocation4], %s379
        %s381 = sand.u32 %s39, 1
        %s382 = smul.addr %s381, 32
        %s383 = scalar_lea.vmem [#allocation3], %s382
        // Predicated region
        $region57: #{tpu_custom_call.1} parent=55 // pred_check
          %p384 = pneg %p52
        $region58: #{tpu_custom_call.1} parent=55 // pred_check_branch
          %386 = sbr.rel (%p384) target = $region60
        $region59: #{tpu_custom_call.1} parent=55 // pred_region
          %387 = dma.done %s380, 512
        $region60: #{tpu_custom_call.1} parent=55 // pred_fallthru
          _
        // Predicated region
        $region61: #{tpu_custom_call.1} parent=55 // pred_check
          %p388 = pneg %p73
        $region62: #{tpu_custom_call.1} parent=55 // pred_check_branch
          %390 = sbr.rel (%p388) target = $region64
        $region63: #{tpu_custom_call.1} parent=55 // pred_region
          %391 = dma.done [#allocation7], 128
        $region64: #{tpu_custom_call.1} parent=55 // pred_fallthru
          _
        // Predicated region
        $region65: #{tpu_custom_call.1} parent=55 // pred_check
          %p392 = pneg %p94
        $region66: #{tpu_custom_call.1} parent=55 // pred_check_branch
          %394 = sbr.rel (%p392) target = $region68
        $region67: #{tpu_custom_call.1} parent=55 // pred_region
          %395 = dma.done [#allocation7], 16
        $region68: #{tpu_custom_call.1} parent=55 // pred_fallthru
          _
        // Predicated region
        $region69: #{tpu_custom_call.1} parent=55 // pred_check
          %p396 = pneg %p115
        $region70: #{tpu_custom_call.1} parent=55 // pred_check_branch
          %398 = sbr.rel (%p396) target = $region72
        $region71: #{tpu_custom_call.1} parent=55 // pred_region
          %399 = dma.done [#allocation10], 16
        $region72: #{tpu_custom_call.1} parent=55 // pred_fallthru
          _
        // Predicated region
        $region73: #{tpu_custom_call.1} parent=55 // pred_check
          %p400 = pneg %p157
        $region74: #{tpu_custom_call.1} parent=55 // pred_check_branch
          %402 = sbr.rel (%p400) target = $region76
        $region75: #{tpu_custom_call.1} parent=55 // pred_region
          %403 = dma.done [#allocation10], 128
        $region76: #{tpu_custom_call.1} parent=55 // pred_fallthru
          _
        // Predicated region
        $region77: #{tpu_custom_call.1} parent=55 // pred_check
          %p404 = pneg %p178
        $region78: #{tpu_custom_call.1} parent=55 // pred_check_branch
          %406 = sbr.rel (%p404) target = $region80
        $region79: #{tpu_custom_call.1} parent=55 // pred_region
          %407 = dma.done [#allocation13], 16
        $region80: #{tpu_custom_call.1} parent=55 // pred_fallthru
          _
        // Predicated region
        $region81: #{tpu_custom_call.1} parent=55 // pred_check
          %p408 = pneg %p199
        $region82: #{tpu_custom_call.1} parent=55 // pred_check_branch
          %410 = sbr.rel (%p408) target = $region84
        $region83: #{tpu_custom_call.1} parent=55 // pred_region
          %411 = dma.done [#allocation13], 256
        $region84: #{tpu_custom_call.1} parent=55 // pred_fallthru
          _
        // Predicated region
        $region85: #{tpu_custom_call.1} parent=55 // pred_check
          %p412 = pneg %p220
        $region86: #{tpu_custom_call.1} parent=55 // pred_check_branch
          %414 = sbr.rel (%p412) target = $region88
        $region87: #{tpu_custom_call.1} parent=55 // pred_region
          %415 = dma.done [#allocation16], 16
        $region88: #{tpu_custom_call.1} parent=55 // pred_fallthru
          _
        %s416 = sand.u32 %s39, 1
        %s417 = scalar_lea.sflag [#allocation4], %s416
        %s418 = sand.u32 %s39, 1
        %s419 = smul.addr %s418, 32
        %s420 = scalar_lea.vmem [#allocation3], %s419
        %p421 = pneg %p52
        %p422 = pneg %p49
        %p423 = pneg %p73
        %p424 = pneg %p70
        %p425 = pneg %p94
        %p426 = pneg %p91
        %p427 = pneg %p115
        %p428 = pneg %p112
        %p429 = pneg %p136
        %p430 = pneg %p133
        %p431 = pneg %p157
        %p432 = pneg %p154
        %p433 = pneg %p178
        %p434 = pneg %p175
        %p435 = pneg %p199
        %p436 = pneg %p196
        %p437 = pneg %p220
        %p438 = pneg %p217
        %p439 = pneg %p246
        %p440 = pneg %p243
        %s441 = sand.u32 %s233, 1
        %s442 = scalar_lea.sflag [#allocation5], %s441
        %s443 = sand.u32 %s233, 1
        %s444 = smul.addr %s443, 8
        %s445 = scalar_lea.vmem [#allocation17], %s444
        %s446 = smul.u32 8, %s31
        %v448 = vld [vmem:[%s383] sm:$0xf]
        %v449 = vld [vmem:[%s383 + $0x4] sm:$0xf]
        %v450 = vld [vmem:[%s383 + $0x8] sm:$0xf]
        %v451 = vld [vmem:[%s383 + $0xc] sm:$0xf]
        %v452 = vld [vmem:[%s383 + $0x10] sm:$0xf]
        %v453 = vld [vmem:[%s383 + $0x14] sm:$0xf]
        %v454 = vld [vmem:[%s383 + $0x18] sm:$0xf]
        %v455 = vld [vmem:[%s383 + $0x1c] sm:$0xf]
        %v456 = vld [vmem:[#allocation6] sm:$0xf]
        %v457 = vld [vmem:[#allocation6 + $0x4] sm:$0xf]
        %v458 = vld [vmem:[#allocation8] sm:$0x1]
        %v460 = vlaneseq
        %v461 = vshrl.u32 %v460, 7
        %v462 = vsub.s32 0, %v461
        %v463 = vrot.slane %v458, %v462
        %v473 = vunpack.c.l.b16 %v448
        %v474 = vunpack.c.l.b16 %v449
        %v475 = vunpack.c.l.b16 %v450
        %v476 = vunpack.c.l.b16 %v451
        %v477 = vunpack.c.l.b16 %v452
        %v478 = vunpack.c.l.b16 %v453
        %v479 = vunpack.c.l.b16 %v454
        %v480 = vunpack.c.l.b16 %v455
        %v481 = vpack.c.b16 %v474, %v473
        %v482 = vpack.c.b16 %v476, %v475
        %v483 = vpack.c.b16 %v478, %v477
        %v484 = vpack.c.b16 %v480, %v479
        %v487 = vunpack.c.l.b16 %v456
        %v488 = vunpack.c.l.b16 %v457
        %v489 = vpack.c.b16 %v488, %v487
        %vm491 = vcmask 130048
        %v493 = vsel %vm491, %v481, 0
        %v496 = vsel %vm491, %v482, 0
        %v499 = vsel %vm491, %v483, 0
        %v502 = vsel %vm491, %v484, 0
        %504 = vmatprep.subr.bf16.mxu0 0
        %505 = vmatpush1.bf16.msra.mxu0 %v489
        %506 = vmatprep.subr.bf16.mxu0 0
        %507 = vmatpush1.bf16.msra.mxu0 0
        %508 = vmatprep.subr.bf16.mxu0 0
        %509 = vmatpush1.bf16.msra.mxu0 0
        %510 = vmatprep.subr.bf16.mxu0 0
        %511 = vmatpush1.bf16.msra.mxu0 0
        %512 = vmatprep.subr.bf16.mxu0 0
        %513 = vmatpush1.bf16.msra.mxu0 0
        %514 = vmatprep.subr.bf16.mxu0 0
        %515 = vmatpush1.bf16.msra.mxu0 0
        %516 = vmatprep.subr.bf16.mxu0 0
        %517 = vmatpush1.bf16.msra.mxu0 0
        %518 = vmatprep.subr.bf16.mxu0 0
        %519 = vmatpush1.bf16.msra.mxu0 0
        %520 = vmatprep.subr.bf16.mxu0 0
        %521 = vmatpush1.bf16.msra.mxu0 0
        %522 = vmatprep.subr.bf16.mxu0 0
        %523 = vmatpush1.bf16.msra.mxu0 0
        %524 = vmatprep.subr.bf16.mxu0 0
        %525 = vmatpush1.bf16.msra.mxu0 0
        %526 = vmatprep.subr.bf16.mxu0 0
        %527 = vmatpush1.bf16.msra.mxu0 0
        %528 = vmatprep.subr.bf16.mxu0 0
        %529 = vmatpush1.bf16.msra.mxu0 0
        %530 = vmatprep.subr.bf16.mxu0 0
        %531 = vmatpush1.bf16.msra.mxu0 0
        %532 = vmatprep.subr.bf16.mxu0 0
        %533 = vmatpush1.bf16.msra.mxu0 0
        %534 = vmatprep.subr.bf16.mxu0 0
        %535 = vmatpush1.bf16.msra.mxu0 0
        %536 = vmatprep.mubr.bf16.mxu0 0
        %537 = vmatmul.mubr.bf16.gmra.mrb[0].mxu0 %v493
        %v538 = vpop.f32.mrb[0].mxu0
        %v539 = vadd.f32 %v463, %v538
        %v540 = vpop.f32.mrb[0].mxu0
        %v541 = vpop.f32.mrb[0].mxu0
        %v542 = vadd.f32 %v463, %v541
        %v543 = vpop.f32.mrb[0].mxu0
        %544 = vmatprep.mubr.bf16.mxu0 0
        %545 = vmatmul.mubr.bf16.gmra.mrb[0].mxu0 %v496
        %v546 = vpop.f32.mrb[0].mxu0
        %v547 = vadd.f32 %v463, %v546
        %v548 = vpop.f32.mrb[0].mxu0
        %v549 = vpop.f32.mrb[0].mxu0
        %v550 = vadd.f32 %v463, %v549
        %v551 = vpop.f32.mrb[0].mxu0
        %552 = vmatprep.mubr.bf16.mxu0 0
        %553 = vmatmul.mubr.bf16.gmra.mrb[0].mxu0 %v499
        %v554 = vpop.f32.mrb[0].mxu0
        %v555 = vadd.f32 %v463, %v554
        %v556 = vpop.f32.mrb[0].mxu0
        %v557 = vpop.f32.mrb[0].mxu0
        %v558 = vadd.f32 %v463, %v557
        %v559 = vpop.f32.mrb[0].mxu0
        %560 = vmatprep.mubr.bf16.mxu0 0
        %561 = vmatmul.mubr.bf16.gmra.mrb[0].mxu0 %v502
        %v562 = vpop.f32.mrb[0].mxu0
        %v563 = vadd.f32 %v463, %v562
        %v564 = vpop.f32.mrb[0].mxu0
        %v565 = vpop.f32.mrb[0].mxu0
        %v566 = vadd.f32 %v463, %v565
        %v567 = vpop.f32.mrb[0].mxu0
        %568 = vdwg.mxu0
        %v569 = vmul.f32 %v539, 0.01
        %v570 = vmul.f32 %v542, 0.01
        %v571 = vmul.f32 %v547, 0.01
        %v572 = vmul.f32 %v550, 0.01
        %v573 = vmul.f32 %v555, 0.01
        %v574 = vmul.f32 %v558, 0.01
        %v575 = vmul.f32 %v563, 0.01
        %v576 = vmul.f32 %v566, 0.01
        %v577 = vmax.f32 %v539, %v569
        %v578 = vmax.f32 %v542, %v570
        %v579 = vmax.f32 %v547, %v571
        %v580 = vmax.f32 %v550, %v572
        %v581 = vmax.f32 %v555, %v573
        %v582 = vmax.f32 %v558, %v574
        %v583 = vmax.f32 %v563, %v575
        %v584 = vmax.f32 %v566, %v576
        %v585 = vld [vmem:[#allocation9] sm:$0x1]
        %v587 = vlaneseq
        %v588 = vshrl.u32 %v587, 7
        %v589 = vsub.s32 0, %v588
        %v590 = vrot.slane %v585, %v589
        %v592 = vmul.f32 %v577, %v590
        %v593 = vmul.f32 %v578, %v590
        %v594 = vmul.f32 %v579, %v590
        %v595 = vmul.f32 %v580, %v590
        %v596 = vmul.f32 %v581, %v590
        %v597 = vmul.f32 %v582, %v590
        %v598 = vmul.f32 %v583, %v590
        %v599 = vmul.f32 %v584, %v590
        %v600 = vsel %vm491, %v592, 0.0
        %601 = vadd.xlane.f32.xlu0 %v600
        %v602 = vpop.xlane.xlu0 %601
        %v603 = vsel %vm491, %v593, 0.0
        %604 = vadd.xlane.f32.xlu0 %v603
        %v605 = vpop.xlane.xlu0 %604
        %v606 = vsel %vm491, %v594, 0.0
        %607 = vadd.xlane.f32.xlu0 %v606
        %v608 = vpop.xlane.xlu0 %607
        %v609 = vsel %vm491, %v595, 0.0
        %610 = vadd.xlane.f32.xlu0 %v609
        %v611 = vpop.xlane.xlu0 %610
        %v612 = vsel %vm491, %v596, 0.0
        %613 = vadd.xlane.f32.xlu0 %v612
        %v614 = vpop.xlane.xlu0 %613
        %v615 = vsel %vm491, %v597, 0.0
        %616 = vadd.xlane.f32.xlu0 %v615
        %v617 = vpop.xlane.xlu0 %616
        %v618 = vsel %vm491, %v598, 0.0
        %619 = vadd.xlane.f32.xlu0 %v618
        %v620 = vpop.xlane.xlu0 %619
        %v621 = vsel %vm491, %v599, 0.0
        %622 = vadd.xlane.f32.xlu0 %v621
        %v623 = vpop.xlane.xlu0 %622
        %s624 = sld [smem:[#allocation2]]
        %v625 = vstv %s624
        %v626 = vadd.f32 %v602, %v625
        %v627 = vadd.f32 %v605, %v625
        %v628 = vadd.f32 %v608, %v625
        %v629 = vadd.f32 %v611, %v625
        %v630 = vadd.f32 %v614, %v625
        %v631 = vadd.f32 %v617, %v625
        %v632 = vadd.f32 %v620, %v625
        %v633 = vadd.f32 %v623, %v625
        %v634 = vlaneseq
        %v635 = vshrl.u32 %v634, 7
        %v636 = vadd.s32 %v635, 8
        %v637 = vadd.s32 %v635, 16
        %v638 = vadd.s32 %v635, 24
        %v639 = vadd.s32 %v635, 32
        %v640 = vadd.s32 %v635, 40
        %v641 = vadd.s32 %v635, 48
        %v642 = vadd.s32 %v635, 56
        %v643 = vlaneseq
        %v644 = vand.u32 %v643, 127
        %v645 = vmul.u32 %v644, 8
        %vm646 = vcmp.ge.s32.totalorder %v635, %v645
        %vm647 = vcmp.ge.s32.totalorder %v636, %v645
        %vm648 = vcmp.ge.s32.totalorder %v637, %v645
        %vm649 = vcmp.ge.s32.totalorder %v638, %v645
        %vm650 = vcmp.ge.s32.totalorder %v639, %v645
        %vm651 = vcmp.ge.s32.totalorder %v640, %v645
        %vm652 = vcmp.ge.s32.totalorder %v641, %v645
        %vm653 = vcmp.ge.s32.totalorder %v642, %v645
        %v654 = vadd.s32 %v644, 1
        %v655 = vmul.u32 %v654, 8
        %vm656 = vcmp.lt.s32.totalorder %v635, %v655
        %vm657 = vcmp.lt.s32.totalorder %v636, %v655
        %vm658 = vcmp.lt.s32.totalorder %v637, %v655
        %vm659 = vcmp.lt.s32.totalorder %v638, %v655
        %vm660 = vcmp.lt.s32.totalorder %v639, %v655
        %vm661 = vcmp.lt.s32.totalorder %v640, %v655
        %vm662 = vcmp.lt.s32.totalorder %v641, %v655
        %vm663 = vcmp.lt.s32.totalorder %v642, %v655
        %vm664 = vmand %vm646, %vm656
        %vm665 = vmand %vm647, %vm657
        %vm666 = vmand %vm648, %vm658
        %vm667 = vmand %vm649, %vm659
        %vm668 = vmand %vm650, %vm660
        %vm669 = vmand %vm651, %vm661
        %vm670 = vmand %vm652, %vm662
        %vm671 = vmand %vm653, %vm663
        %v672 = vmul.u32 %v635, 8
        %vm673 = vcmp.ge.s32.totalorder %v644, %v672
        %v674 = vadd.s32 %v635, 1
        %v675 = vmul.u32 %v674, 8
        %vm676 = vcmp.lt.s32.totalorder %v644, %v675
        %vm677 = vmand %vm673, %vm676
        %v678 = vsel %vm664, %v626, -1e+30
        %v679 = vsel %vm665, %v627, -1e+30
        %v680 = vsel %vm666, %v628, -1e+30
        %v681 = vsel %vm667, %v629, -1e+30
        %v682 = vsel %vm668, %v630, -1e+30
        %v683 = vsel %vm669, %v631, -1e+30
        %v684 = vsel %vm670, %v632, -1e+30
        %v685 = vsel %vm671, %v633, -1e+30
        %vm686 = vcmask 64512
        %v687 = vsel %vm686, %v678, -inf
        %v688 = vsel %vm686, %v679, -inf
        %v689 = vsel %vm686, %v680, -inf
        %v690 = vsel %vm686, %v681, -inf
        %v691 = vsel %vm686, %v682, -inf
        %v692 = vmax.f32 %v687, %v691
        %v693 = vsel %vm686, %v683, -inf
        %v694 = vmax.f32 %v688, %v693
        %v695 = vsel %vm686, %v684, -inf
        %v696 = vmax.f32 %v689, %v695
        %v697 = vsel %vm686, %v685, -inf
        %v698 = vmax.f32 %v690, %v697
        %v699 = vmax.f32 %v692, %v694
        %v700 = vmax.f32 %v696, %v698
        %v701 = vmax.f32 %v699, %v700
        %v702 = vrot.slane %v701, 4
        %v703 = vmax.f32 %v701, %v702
        %v704 = vrot.slane %v703, 2
        %v705 = vmax.f32 %v703, %v704
        %v706 = vrot.slane %v705, 1
        %v707 = vmax.f32 %v705, %v706
        %v708 = vsel %vm664, %v707, 0.0
        %v709 = vsel %vm665, %v707, 0.0
        %v710 = vsel %vm666, %v707, 0.0
        %v711 = vsel %vm667, %v707, 0.0
        %v712 = vsel %vm668, %v707, 0.0
        %v713 = vsel %vm669, %v707, 0.0
        %v714 = vsel %vm670, %v707, 0.0
        %v715 = vsel %vm671, %v707, 0.0
        %v716 = vsel %vm686, %v708, 0.0
        %717 = vadd.xlane.f32.xlu0 %v716
        %v718 = vpop.xlane.xlu0 %717
        %v719 = vsel %vm686, %v709, 0.0
        %720 = vadd.xlane.f32.xlu0 %v719
        %v721 = vpop.xlane.xlu0 %720
        %v722 = vsel %vm686, %v710, 0.0
        %723 = vadd.xlane.f32.xlu0 %v722
        %v724 = vpop.xlane.xlu0 %723
        %v725 = vsel %vm686, %v711, 0.0
        %726 = vadd.xlane.f32.xlu0 %v725
        %v727 = vpop.xlane.xlu0 %726
        %v728 = vsel %vm686, %v712, 0.0
        %729 = vadd.xlane.f32.xlu0 %v728
        %v730 = vpop.xlane.xlu0 %729
        %v731 = vsel %vm686, %v713, 0.0
        %732 = vadd.xlane.f32.xlu0 %v731
        %v733 = vpop.xlane.xlu0 %732
        %v734 = vsel %vm686, %v714, 0.0
        %735 = vadd.xlane.f32.xlu0 %v734
        %v736 = vpop.xlane.xlu0 %735
        %v737 = vsel %vm686, %v715, 0.0
        %738 = vadd.xlane.f32.xlu0 %v737
        %v739 = vpop.xlane.xlu0 %738
        %v740 = vsub.f32 %v626, %v718
        %v741 = vsub.f32 %v627, %v721
        %v742 = vsub.f32 %v628, %v724
        %v743 = vsub.f32 %v629, %v727
        %v744 = vsub.f32 %v630, %v730
        %v745 = vsub.f32 %v631, %v733
        %v746 = vsub.f32 %v632, %v736
        %v747 = vsub.f32 %v633, %v739
        %v748 = vmul.f32 %v740, 1.442695
        %v749 = vpow.pop %v748
        %v750 = vmul.f32 %v741, 1.442695
        %v751 = vpow.pop %v750
        %v752 = vmul.f32 %v742, 1.442695
        %v753 = vpow.pop %v752
        %v754 = vmul.f32 %v743, 1.442695
        %v755 = vpow.pop %v754
        %v756 = vmul.f32 %v744, 1.442695
        %v757 = vpow.pop %v756
        %v758 = vmul.f32 %v745, 1.442695
        %v759 = vpow.pop %v758
        %v760 = vmul.f32 %v746, 1.442695
        %v761 = vpow.pop %v760
        %v762 = vmul.f32 %v747, 1.442695
        %v763 = vpow.pop %v762
        %v764 = vsel %vm677, 1, 0
        %v765 = vcvt.s32.f32 %v764
        %v766 = vpack.c.bf16 %v765, %v765
        %v767 = vpack.c.bf16 %v751, %v749
        %v768 = vpack.c.bf16 %v755, %v753
        %v769 = vpack.c.bf16 %v759, %v757
        %v770 = vpack.c.bf16 %v763, %v761
        %vm771 = vcmask 523264
        %v773 = vsel %vm771, %v766, 0
        %775 = vmatprep.subr.bf16.mxu0 0
        %776 = vmatpush1.bf16.msra.mxu0 %v767
        %777 = vmatprep.subr.bf16.mxu0 0
        %778 = vmatpush1.bf16.msra.mxu0 %v768
        %779 = vmatprep.subr.bf16.mxu0 0
        %780 = vmatpush1.bf16.msra.mxu0 %v769
        %781 = vmatprep.subr.bf16.mxu0 0
        %782 = vmatpush1.bf16.msra.mxu0 %v770
        %783 = vmatprep.subr.bf16.mxu0 0
        %784 = vmatpush1.bf16.msra.mxu0 0
        %785 = vmatprep.subr.bf16.mxu0 0
        %786 = vmatpush1.bf16.msra.mxu0 0
        %787 = vmatprep.subr.bf16.mxu0 0
        %788 = vmatpush1.bf16.msra.mxu0 0
        %789 = vmatprep.subr.bf16.mxu0 0
        %790 = vmatpush1.bf16.msra.mxu0 0
        %791 = vmatprep.subr.bf16.mxu0 0
        %792 = vmatpush1.bf16.msra.mxu0 0
        %793 = vmatprep.subr.bf16.mxu0 0
        %794 = vmatpush1.bf16.msra.mxu0 0
        %795 = vmatprep.subr.bf16.mxu0 0
        %796 = vmatpush1.bf16.msra.mxu0 0
        %797 = vmatprep.subr.bf16.mxu0 0
        %798 = vmatpush1.bf16.msra.mxu0 0
        %799 = vmatprep.subr.bf16.mxu0 0
        %800 = vmatpush1.bf16.msra.mxu0 0
        %801 = vmatprep.subr.bf16.mxu0 0
        %802 = vmatpush1.bf16.msra.mxu0 0
        %803 = vmatprep.subr.bf16.mxu0 0
        %804 = vmatpush1.bf16.msra.mxu0 0
        %805 = vmatprep.subr.bf16.mxu0 0
        %806 = vmatpush1.bf16.msra.mxu0 0
        %807 = vmatprep.mubr.bf16.mxu0 0
        %808 = vmatmul.mubr.bf16.gmra.mrb[0].mxu0 %v773
        %v809 = vpop.f32.mrb[0].mxu0
        %v810 = vadd.f32 0.0, %v809
        %v811 = vpop.f32.mrb[0].mxu0
        %v812 = vpop.f32.mrb[0].mxu0
        %v813 = vpop.f32.mrb[0].mxu0
        %814 = vdwg.mxu0
        %v819 = vmul.bf16 %v767, %v481
        %v820 = vmul.bf16 %v768, %v482
        %v821 = vmul.bf16 %v769, %v483
        %v822 = vmul.bf16 %v770, %v484
        %823 = vmatprep.subr.bf16.mxu0 0
        %824 = vmatpush1.bf16.msra.mxu0 %v819
        %825 = vmatprep.subr.bf16.mxu0 0
        %826 = vmatpush1.bf16.msra.mxu0 %v820
        %827 = vmatprep.subr.bf16.mxu0 0
        %828 = vmatpush1.bf16.msra.mxu0 %v821
        %829 = vmatprep.subr.bf16.mxu0 0
        %830 = vmatpush1.bf16.msra.mxu0 %v822
        %831 = vmatprep.subr.bf16.mxu0 0
        %832 = vmatpush1.bf16.msra.mxu0 0
        %833 = vmatprep.subr.bf16.mxu0 0
        %834 = vmatpush1.bf16.msra.mxu0 0
        %835 = vmatprep.subr.bf16.mxu0 0
        %836 = vmatpush1.bf16.msra.mxu0 0
        %837 = vmatprep.subr.bf16.mxu0 0
        %838 = vmatpush1.bf16.msra.mxu0 0
        %839 = vmatprep.subr.bf16.mxu0 0
        %840 = vmatpush1.bf16.msra.mxu0 0
        %841 = vmatprep.subr.bf16.mxu0 0
        %842 = vmatpush1.bf16.msra.mxu0 0
        %843 = vmatprep.subr.bf16.mxu0 0
        %844 = vmatpush1.bf16.msra.mxu0 0
        %845 = vmatprep.subr.bf16.mxu0 0
        %846 = vmatpush1.bf16.msra.mxu0 0
        %847 = vmatprep.subr.bf16.mxu0 0
        %848 = vmatpush1.bf16.msra.mxu0 0
        %849 = vmatprep.subr.bf16.mxu0 0
        %850 = vmatpush1.bf16.msra.mxu0 0
        %851 = vmatprep.subr.bf16.mxu0 0
        %852 = vmatpush1.bf16.msra.mxu0 0
        %853 = vmatprep.subr.bf16.mxu0 0
        %854 = vmatpush1.bf16.msra.mxu0 0
        %855 = vmatprep.mubr.bf16.mxu0 0
        %856 = vmatmul.mubr.bf16.gmra.mrb[0].mxu0 %v773
        %v857 = vpop.f32.mrb[0].mxu0
        %v858 = vadd.f32 0.0, %v857
        %v859 = vpop.f32.mrb[0].mxu0
        %v860 = vpop.f32.mrb[0].mxu0
        %v861 = vpop.f32.mrb[0].mxu0
        %862 = vdwg.mxu0
        %v863 = vrcp.pop %v810
        %865 = vset.pattern.permute.xlu0 0
        %866 = vperm.xlu0 %865, %v863
        %v867 = vpop.permute.xlu0 %866
        %v869 = vmul.f32 %v858, %v867
        %v870 = vpack.c.bf16 %v869, %v869
        %v871 = vld [vmem:[#allocation11] sm:$0xf]
        %v872 = vld [vmem:[#allocation11 + $0x4] sm:$0xf]
        %v873 = vld [vmem:[#allocation12] sm:$0x1]
        %v875 = vlaneseq
        %v876 = vshrl.u32 %v875, 7
        %v877 = vsub.s32 0, %v876
        %v878 = vrot.slane %v873, %v877
        %v882 = vunpack.c.l.b16 %v871
        %v883 = vunpack.c.l.b16 %v872
        %v884 = vpack.c.b16 %v883, %v882
        %v887 = vsel %vm491, %v870, 0
        %889 = vmatprep.subr.bf16.mxu0 0
        %890 = vmatpush1.bf16.msra.mxu0 %v884
        %891 = vmatprep.subr.bf16.mxu0 0
        %892 = vmatpush1.bf16.msra.mxu0 0
        %893 = vmatprep.subr.bf16.mxu0 0
        %894 = vmatpush1.bf16.msra.mxu0 0
        %895 = vmatprep.subr.bf16.mxu0 0
        %896 = vmatpush1.bf16.msra.mxu0 0
        %897 = vmatprep.subr.bf16.mxu0 0
        %898 = vmatpush1.bf16.msra.mxu0 0
        %899 = vmatprep.subr.bf16.mxu0 0
        %900 = vmatpush1.bf16.msra.mxu0 0
        %901 = vmatprep.subr.bf16.mxu0 0
        %902 = vmatpush1.bf16.msra.mxu0 0
        %903 = vmatprep.subr.bf16.mxu0 0
        %904 = vmatpush1.bf16.msra.mxu0 0
        %905 = vmatprep.subr.bf16.mxu0 0
        %906 = vmatpush1.bf16.msra.mxu0 0
        %907 = vmatprep.subr.bf16.mxu0 0
        %908 = vmatpush1.bf16.msra.mxu0 0
        %909 = vmatprep.subr.bf16.mxu0 0
        %910 = vmatpush1.bf16.msra.mxu0 0
        %911 = vmatprep.subr.bf16.mxu0 0
        %912 = vmatpush1.bf16.msra.mxu0 0
        %913 = vmatprep.subr.bf16.mxu0 0
        %914 = vmatpush1.bf16.msra.mxu0 0
        %915 = vmatprep.subr.bf16.mxu0 0
        %916 = vmatpush1.bf16.msra.mxu0 0
        %917 = vmatprep.subr.bf16.mxu0 0
        %918 = vmatpush1.bf16.msra.mxu0 0
        %919 = vmatprep.subr.bf16.mxu0 0
        %920 = vmatpush1.bf16.msra.mxu0 0
        %921 = vmatprep.mubr.bf16.mxu0 0
        %922 = vmatmul.mubr.bf16.gmra.mrb[0].mxu0 %v887
        %v923 = vpop.f32.mrb[0].mxu0
        %v924 = vadd.f32 %v878, %v923
        %v925 = vpop.f32.mrb[0].mxu0
        %v926 = vpop.f32.mrb[0].mxu0
        %v927 = vpop.f32.mrb[0].mxu0
        %928 = vdwg.mxu0
        %v929 = vtanh.pop %v924
        %v930 = vpack.c.bf16 %v929, %v929
        %v931 = vld [vmem:[#allocation14] sm:$0xf]
        %v932 = vld [vmem:[#allocation14 + $0x4] sm:$0xf]
        %v933 = vld [vmem:[#allocation14 + $0x8] sm:$0xf]
        %v934 = vld [vmem:[#allocation14 + $0xc] sm:$0xf]
        %v935 = vld [vmem:[#allocation15] sm:$0x1]
        %v937 = vlaneseq
        %v938 = vshrl.u32 %v937, 7
        %v939 = vsub.s32 0, %v938
        %v940 = vrot.slane %v935, %v939
        %v946 = vunpack.c.l.b16 %v931
        %v947 = vunpack.c.l.b16 %v932
        %v948 = vunpack.c.l.b16 %v933
        %v949 = vunpack.c.l.b16 %v934
        %v950 = vpack.c.b16 %v947, %v946
        %v951 = vpack.c.b16 %v949, %v948
        %vm954 = vcmask 261120
        %v956 = vsel %vm954, %v930, 0
        %958 = vmatprep.subr.bf16.mxu0 0
        %959 = vmatpush1.bf16.msra.mxu0 %v950
        %960 = vmatprep.subr.bf16.mxu0 0
        %961 = vmatpush1.bf16.msra.mxu0 %v951
        %962 = vmatprep.subr.bf16.mxu0 0
        %963 = vmatpush1.bf16.msra.mxu0 0
        %964 = vmatprep.subr.bf16.mxu0 0
        %965 = vmatpush1.bf16.msra.mxu0 0
        %966 = vmatprep.subr.bf16.mxu0 0
        %967 = vmatpush1.bf16.msra.mxu0 0
        %968 = vmatprep.subr.bf16.mxu0 0
        %969 = vmatpush1.bf16.msra.mxu0 0
        %970 = vmatprep.subr.bf16.mxu0 0
        %971 = vmatpush1.bf16.msra.mxu0 0
        %972 = vmatprep.subr.bf16.mxu0 0
        %973 = vmatpush1.bf16.msra.mxu0 0
        %974 = vmatprep.subr.bf16.mxu0 0
        %975 = vmatpush1.bf16.msra.mxu0 0
        %976 = vmatprep.subr.bf16.mxu0 0
        %977 = vmatpush1.bf16.msra.mxu0 0
        %978 = vmatprep.subr.bf16.mxu0 0
        %979 = vmatpush1.bf16.msra.mxu0 0
        %980 = vmatprep.subr.bf16.mxu0 0
        %981 = vmatpush1.bf16.msra.mxu0 0
        %982 = vmatprep.subr.bf16.mxu0 0
        %983 = vmatpush1.bf16.msra.mxu0 0
        %984 = vmatprep.subr.bf16.mxu0 0
        %985 = vmatpush1.bf16.msra.mxu0 0
        %986 = vmatprep.subr.bf16.mxu0 0
        %987 = vmatpush1.bf16.msra.mxu0 0
        %988 = vmatprep.subr.bf16.mxu0 0
        %989 = vmatpush1.bf16.msra.mxu0 0
        %990 = vmatprep.mubr.bf16.mxu0 0
        %991 = vmatmul.mubr.bf16.gmra.mrb[0].mxu0 %v956
        %v992 = vpop.f32.mrb[0].mxu0
        %v993 = vadd.f32 %v940, %v992
        %v994 = vpop.f32.mrb[0].mxu0
        %v995 = vpop.f32.mrb[0].mxu0
        %v996 = vpop.f32.mrb[0].mxu0
        %997 = vdwg.mxu0
        %998 = vst [vmem:[%s445] sm:$0xff] %v993
        %s999 = sand.u32 %s233, 1
        %s1000 = scalar_lea.sflag [#allocation5], %s999
        %s1001 = sand.u32 %s233, 1
        %s1002 = smul.addr %s1001, 8
        %s1003 = scalar_lea.vmem [#allocation17], %s1002
        // Predicated region
        $region89: #{tpu_custom_call.1} parent=55 // pred_check
          %p1004 = pneg %p243
        $region90: #{tpu_custom_call.1} parent=55 // pred_check_branch
          %1006 = sbr.rel (%p1004) target = $region92
        $region91: #{tpu_custom_call.1} parent=55 // pred_region
          %s1008 = ssub.s32 128, 128
          %1009 = vsyncadd %s1000, %s1008
          %s1010 = smul.addr %s31, 128
          %s1011 = scalar_lea.hbm %s9, %s1010
          %s1013 = sshll.u32 %s1003, 4
          %s1014 = int_to_ptr.vmem [resolvable:$true] %s1013
          %1016 = dma.vmem_to_hbm [thread:$0]  %s1014, 128, %s1011, %s1000
        $region92: #{tpu_custom_call.1} parent=55 // pred_fallthru
          _
      $region56: #{tpu_custom_call.1} parent=5 // pred_fallthru
        _
      %p1017 = scmp.le.s32.totalorder 2, %s26
      // Predicated region
      $region93: #{tpu_custom_call.1} parent=5 // pred_check
        %p1018 = pneg %p1017
      $region94: #{tpu_custom_call.1} parent=5 // pred_check_branch
        %1020 = sbr.rel (%p1018) target = $region96
      $region95: #{tpu_custom_call.1} parent=5 // pred_region
        %s1021 = ssub.s32 %s26, 2
        // Predicated region
        $region97: #{tpu_custom_call.1} parent=95 // pred_check
          %p1022 = pneg %p249
        $region98: #{tpu_custom_call.1} parent=95 // pred_check_branch
          %1024 = sbr.rel (%p1022) target = $region100
        $region99: #{tpu_custom_call.1} parent=95 // pred_region
          %s1025 = sand.u32 %s234, 1
          %s1026 = scalar_lea.sflag [#allocation5], %s1025
          %s1027 = sand.u32 %s234, 1
          %s1028 = smul.addr %s1027, 8
          %s1029 = scalar_lea.vmem [#allocation17], %s1028
          %1030 = dma.done %s1026, 128
        $region100: #{tpu_custom_call.1} parent=95 // pred_fallthru
          _
      $region96: #{tpu_custom_call.1} parent=5 // pred_fallthru
        _
    $region6: #{tpu_custom_call.1} parent=1 // loop_footer
      %s30 = sadd.s32 1, %s26
    $region7: #{tpu_custom_call.1} parent=1 // loop_footer_branch
      %25 = sbr.rel target = $region3
    $region8: #{tpu_custom_call.1} parent=1 // loop_exit
      _
    %1031 = vsyncpa [#allocation4], 1
    %s1032 = scalar_lea.sflag [#allocation4], 1
    %1033 = vsyncpa %s1032, 1
    %1034 = vsyncpa [#allocation7], 1
    %1035 = vsyncpa [#allocation10], 1
    %1036 = vsyncpa [#allocation13], 1
    %1037 = vsyncpa [#allocation16], 1
    %1038 = vsyncpa [#allocation5], 1
    %s1039 = scalar_lea.sflag [#allocation5], 1
    %1040 = vsyncpa %s1039, 1

</llo_original>
